<compile_context>
chip_gen: v6e
topology: v6e:2x2x1
jax: 0.10.0
libtpu: 0.0.40
codegen_flags: <defaults>
</compile_context>

<pallas_src>
import functools

import jax
import jax.numpy as jnp
from jax.experimental import pallas as pl
from jax.experimental.pallas import tpu as pltpu

EPS = 1e-5  # nn.LayerNorm default eps


def _layernorm(x, gamma, beta):
    mu = jnp.mean(x, axis=-1, keepdims=True)
    xc = x - mu
    var = jnp.mean(xc * xc, axis=-1, keepdims=True)
    inv = jax.lax.rsqrt(var + EPS)
    return xc * inv * gamma + beta


def transformer_block_kernel(x_ref,
                             g1_ref, be1_ref, g2_ref, be2_ref,
                             wqkv_ref, bqkv_ref, wo_ref, bo_ref,
                             w1_ref, bf1_ref, w2_ref, bf2_ref,
                             y_ref, kv_ref,
                             o_scratch,
                             *, batch, seq, num_heads):
    N, E = x_ref.shape                          # N = batch * seq
    H = num_heads
    Dh = E // H
    HB = H * batch
    scale = 1.0 / (Dh ** 0.5)

    x = x_ref[...].astype(jnp.float32)          # (N, E)

    # ---- LayerNorm 1 (f32) ----
    xn = _layernorm(x, g1_ref[...], be1_ref[...])
    kv_ref[...] = xn.astype(kv_ref.dtype)       # k = v = norm1(x)

    # ---- packed QKV projection: ONE (N,E)x(E,3E) MXU call ----
    qkv = jnp.dot(xn.astype(jnp.bfloat16), wqkv_ref[...],
                  preferred_element_type=jnp.float32) + bqkv_ref[...]    # (N, 3E) f32

    # ---- head fold: heads -> leading (einsum batch) axis, index = h*B + b ----
    # (static lane slices + leading-dim concat; no lane-dim reshape needed)
    q = jnp.concatenate([qkv[:, h * Dh:(h + 1) * Dh] for h in range(H)], axis=0)
    k = jnp.concatenate([qkv[:, E + h * Dh:E + (h + 1) * Dh] for h in range(H)], axis=0)
    v = jnp.concatenate([qkv[:, 2 * E + h * Dh:2 * E + (h + 1) * Dh] for h in range(H)], axis=0)
    q = (q * scale).reshape(HB, seq, Dh)        # (H*B, S, Dh)
    k = k.reshape(HB, seq, Dh)
    v = v.reshape(HB, seq, Dh)

    # ---- attention: one batched dot_general pair over H*B ----
    s = jnp.einsum('bqd,bkd->bqk',
                   q.astype(jnp.bfloat16), k.astype(jnp.bfloat16),
                   preferred_element_type=jnp.float32)                   # (HB, S, S) f32
    s = s - jnp.max(s, axis=-1, keepdims=True)
    p = jnp.exp(s)
    p = p * pl.reciprocal(jnp.sum(p, axis=-1, keepdims=True), approx=True)
    o = jnp.einsum('bqk,bkd->bqd',
                   p.astype(jnp.bfloat16), v.astype(jnp.bfloat16),
                   preferred_element_type=jnp.float32)                   # (HB, S, Dh) f32

    # ---- un-fold heads into one contiguous (N, E) buffer, then ONE W_o dot ----
    for h in range(H):
        o_scratch[:, h * Dh:(h + 1) * Dh] = o[h * batch:(h + 1) * batch].reshape(N, Dh)
    attn = jnp.dot(o_scratch[...].astype(jnp.bfloat16), wo_ref[...],
                   preferred_element_type=jnp.float32) + bo_ref[...]     # (N, E) f32

    # ---- residual 1 ----
    x1 = x + attn

    # ---- LayerNorm 2 + FFN (exact-erf GELU = nn.GELU default) ----
    xn2 = _layernorm(x1, g2_ref[...], be2_ref[...])
    h1 = jnp.dot(xn2.astype(jnp.bfloat16), w1_ref[...],
                 preferred_element_type=jnp.float32) + bf1_ref[...]      # (N, 4E)
    h1 = 0.5 * h1 * (1.0 + jax.lax.erf(h1 * 0.7071067811865476))
    h2 = jnp.dot(h1.astype(jnp.bfloat16), w2_ref[...],
                 preferred_element_type=jnp.float32) + bf2_ref[...]      # (N, E)
    # Dropout(0.1): identity in inference mode.

    # ---- residual 2 ----
    y_ref[...] = (x1 + h2).astype(y_ref.dtype)


def prepare_params(params):
    """One-time parameter preparation ("store bf16 at init"): matmul weights go
    to bf16, LayerNorm params and biases stay f32.  Do NOT call per-forward."""
    (g1, be1, g2, be2, wqkv, bqkv, wo, bo, w1, bf1, w2, bf2) = params
    return (g1, be1, g2, be2,
            wqkv.astype(jnp.bfloat16), bqkv,
            wo.astype(jnp.bfloat16), bo,
            w1.astype(jnp.bfloat16), bf1,
            w2.astype(jnp.bfloat16), bf2)


def transformer_block(x, prepped_params, num_heads):
    """x: (B, S, E) f32, prepped_params from prepare_params().
    Returns (y, (k, v)) matching the PyTorch forward with kv_cache=None
    (k = v = norm1(x))."""
    B, S, E = x.shape
    N = B * S
    (g1, be1, g2, be2, wqkv_bf, bqkv, wo_bf, bo, w1_bf, bf1, w2_bf, bf2) = prepped_params

    x_flat = x.reshape(N, E)   # whole batch processed in one kernel invocation

    kernel = functools.partial(transformer_block_kernel,
                               batch=B, seq=S, num_heads=num_heads)

    # No grid: single invocation over the full (tiny) problem, so every input
    # (including the weights) is copied into VMEM exactly once.  For production
    # sizes: add a leading row-tile grid axis over B*S marked "parallel"
    # (weights with pipeline_mode=pl.Buffered(1)), K-tile the FFN, and re-derive
    # the VMEM budget per generation (64 MiB on v7x).
    y_flat, kv_flat = pl.pallas_call(
        kernel,
        out_shape=[jax.ShapeDtypeStruct((N, E), x.dtype),
                   jax.ShapeDtypeStruct((N, E), x.dtype)],
        scratch_shapes=[pltpu.VMEM((N, E), jnp.float32)],
        compiler_params=pltpu.CompilerParams(vmem_limit_bytes=32 << 20),
    )(x_flat, g1, be1, g2, be2, wqkv_bf, bqkv, wo_bf, bo, w1_bf, bf1, w2_bf, bf2)

    y = y_flat.reshape(B, S, E)
    kv = kv_flat.reshape(B, S, E)
    # TODO(synk): the kv_cache != None (cross-attention against cached k/v)
    # branch of the PyTorch forward is not implemented; only self-attention.
    return y, (kv, kv)


def reference(x, params, num_heads):
    """Pure-JAX f32 reference of the PyTorch forward (kv_cache=None, eval mode)."""
    (g1, be1, g2, be2, wqkv, bqkv, wo, bo, w1, bf1, w2, bf2) = params
    B, S, E = x.shape
    Dh = E // num_heads

    def ln(z, g, b):
        mu = z.mean(-1, keepdims=True)
        var = ((z - mu) ** 2).mean(-1, keepdims=True)
        return (z - mu) / jnp.sqrt(var + EPS) * g + b

    xn = ln(x, g1, be1)
    qkv = xn @ wqkv + bqkv
    q, k, v = qkv[..., :E], qkv[..., E:2 * E], qkv[..., 2 * E:]

    def split(t):
        return t.reshape(B, S, num_heads, Dh).transpose(0, 2, 1, 3)

    qh, kh, vh = split(q) / (Dh ** 0.5), split(k), split(v)
    s = jnp.einsum("bhqd,bhkd->bhqk", qh, kh)
    p = jax.nn.softmax(s, axis=-1)
    o = jnp.einsum("bhqk,bhkd->bhqd", p, vh).transpose(0, 2, 1, 3).reshape(B, S, E)
    attn = o @ wo + bo
    x1 = x + attn
    h = ln(x1, g2, be2) @ w1 + bf1
    h = 0.5 * h * (1.0 + jax.lax.erf(h * 0.7071067811865476))
    return x1 + (h @ w2 + bf2), (xn, xn)


if __name__ == "__main__":
    # Config: embed_dim=8, num_heads=2, max_seq_len=8
    B, S, E, H = 2, 8, 8, 2
    H4 = 4 * E
    key = jax.random.PRNGKey(0)
    ks = jax.random.split(key, 12)

    x = jax.random.normal(ks[0], (B, S, E), jnp.float32)

    params = (
        1.0 + 0.1 * jax.random.normal(ks[1], (1, E), jnp.float32),   # gamma1
        0.1 * jax.random.normal(ks[2], (1, E), jnp.float32),         # beta1
        1.0 + 0.1 * jax.random.normal(ks[3], (1, E), jnp.float32),   # gamma2
        0.1 * jax.random.normal(ks[4], (1, E), jnp.float32),         # beta2
        0.2 * jax.random.normal(ks[5], (E, 3 * E), jnp.float32),     # in_proj_weight.T
        0.1 * jax.random.normal(ks[6], (1, 3 * E), jnp.float32),     # in_proj_bias
        0.2 * jax.random.normal(ks[7], (E, E), jnp.float32),         # out_proj.weight.T
        0.1 * jax.random.normal(ks[8], (1, E), jnp.float32),         # out_proj.bias
        0.2 * jax.random.normal(ks[9], (E, H4), jnp.float32),        # ffn w1.T
        0.1 * jax.random.normal(ks[10], (1, H4), jnp.float32),       # ffn b1
        0.2 * jax.random.normal(ks[11], (H4, E), jnp.float32),       # ffn w2.T
        jnp.zeros((1, E), jnp.float32),                              # ffn b2
    )

    # One-time bf16 weight preparation (equivalent to storing bf16 params at init).
    prepped = prepare_params(params)

    y, (k_cache, v_cache) = transformer_block(x, prepped, H)
    jax.block_until_ready(y)
    jax.block_until_ready(k_cache)

    y_ref, (k_ref, _) = reference(x, params, H)
    # kv = norm1(x) is computed fully in f32 -> tight tolerance.
    assert jnp.allclose(k_cache, k_ref, atol=1e-4, rtol=1e-4), "kv mismatch"
    # y goes through bf16-operand MXU matmuls (f32 accumulation) -> looser
    # tolerance vs the all-f32 reference.
    assert jnp.allclose(y, y_ref, atol=5e-2, rtol=5e-2), "output mismatch"

    print("KERNEL_OK")
</pallas_src>

<mosaic_0001>
module attributes {stable_mosaic.version = 11 : i64} {
  func.func @transformer_block_kernel(%arg0: memref<16x8xf32, #tpu.memory_space<vmem>>, %arg1: memref<1x8xf32, #tpu.memory_space<vmem>>, %arg2: memref<1x8xf32, #tpu.memory_space<vmem>>, %arg3: memref<1x8xf32, #tpu.memory_space<vmem>>, %arg4: memref<1x8xf32, #tpu.memory_space<vmem>>, %arg5: memref<8x24xbf16, #tpu.memory_space<vmem>>, %arg6: memref<1x24xf32, #tpu.memory_space<vmem>>, %arg7: memref<8x8xbf16, #tpu.memory_space<vmem>>, %arg8: memref<1x8xf32, #tpu.memory_space<vmem>>, %arg9: memref<8x32xbf16, #tpu.memory_space<vmem>>, %arg10: memref<1x32xf32, #tpu.memory_space<vmem>>, %arg11: memref<32x8xbf16, #tpu.memory_space<vmem>>, %arg12: memref<1x8xf32, #tpu.memory_space<vmem>>, %arg13: memref<16x8xf32, #tpu.memory_space<vmem>>, %arg14: memref<16x8xf32, #tpu.memory_space<vmem>>, %arg15: memref<16x8xf32, #tpu.memory_space<vmem>>) attributes {dimension_semantics = [], scalar_prefetch = 0 : i64, scratch_operands = 1 : i64, tpu.core_type = #tpu.core_type<tc>} {
    %c0 = arith.constant 0 : index
    %c0_0 = arith.constant 0 : index
    %0 = vector.load %arg0[%c0, %c0_0] : memref<16x8xf32, #tpu.memory_space<vmem>>, vector<16x8xf32>
    %c0_1 = arith.constant 0 : index
    %c0_2 = arith.constant 0 : index
    %1 = vector.load %arg1[%c0_1, %c0_2] : memref<1x8xf32, #tpu.memory_space<vmem>>, vector<1x8xf32>
    %c0_3 = arith.constant 0 : index
    %c0_4 = arith.constant 0 : index
    %2 = vector.load %arg2[%c0_3, %c0_4] : memref<1x8xf32, #tpu.memory_space<vmem>>, vector<1x8xf32>
    %cst = arith.constant dense<0.000000e+00> : vector<16xf32>
    %3 = vector.multi_reduction <add>, %0, %cst [1] : vector<16x8xf32> to vector<16xf32>
    %4 = vector.shape_cast %3 : vector<16xf32> to vector<16x1xf32>
    %cst_5 = arith.constant 8.000000e+00 : f32
    %5 = vector.broadcast %cst_5 : f32 to vector<16x1xf32>
    %6 = arith.divf %4, %5 : vector<16x1xf32>
    %7 = vector.broadcast %6 : vector<16x1xf32> to vector<16x8xf32>
    %8 = arith.subf %0, %7 : vector<16x8xf32>
    %9 = arith.mulf %8, %8 : vector<16x8xf32>
    %cst_6 = arith.constant dense<0.000000e+00> : vector<16xf32>
    %10 = vector.multi_reduction <add>, %9, %cst_6 [1] : vector<16x8xf32> to vector<16xf32>
    %11 = vector.shape_cast %10 : vector<16xf32> to vector<16x1xf32>
    %cst_7 = arith.constant 8.000000e+00 : f32
    %12 = vector.broadcast %cst_7 : f32 to vector<16x1xf32>
    %13 = arith.divf %11, %12 : vector<16x1xf32>
    %cst_8 = arith.constant 9.99999974E-6 : f32
    %14 = vector.broadcast %cst_8 : f32 to vector<16x1xf32>
    %15 = arith.addf %13, %14 : vector<16x1xf32>
    %16 = math.rsqrt %15 : vector<16x1xf32>
    %17 = vector.broadcast %16 : vector<16x1xf32> to vector<16x8xf32>
    %18 = arith.mulf %8, %17 : vector<16x8xf32>
    %19 = vector.broadcast %1 : vector<1x8xf32> to vector<16x8xf32>
    %20 = arith.mulf %18, %19 : vector<16x8xf32>
    %21 = vector.broadcast %2 : vector<1x8xf32> to vector<16x8xf32>
    %22 = arith.addf %20, %21 : vector<16x8xf32>
    %c0_9 = arith.constant 0 : index
    %c0_10 = arith.constant 0 : index
    %23 = vector.load %arg14[%c0_9, %c0_10] : memref<16x8xf32, #tpu.memory_space<vmem>>, vector<16x8xf32>
    tpu.vector_store %arg14[%c0_9, %c0_10], %22 {strides = array<i32>} : memref<16x8xf32, #tpu.memory_space<vmem>>, vector<16x8xf32>,
    %24 = arith.truncf %22 : vector<16x8xf32> to vector<16x8xbf16>
    %c0_11 = arith.constant 0 : index
    %c0_12 = arith.constant 0 : index
    %25 = vector.load %arg5[%c0_11, %c0_12] : memref<8x24xbf16, #tpu.memory_space<vmem>>, vector<8x24xbf16>
    %cst_13 = arith.constant dense<0.000000e+00> : vector<16x24xf32>
    %26 = tpu.matmul %24, %25, %cst_13 {dimension_numbers = #tpu.dot_dimension_numbers<[1], [0], [0], [1], [0, 0, 1, 1], [], []>} : vector<16x8xbf16>, vector<8x24xbf16>, vector<16x24xf32> -> vector<16x24xf32>
    %c0_14 = arith.constant 0 : index
    %c0_15 = arith.constant 0 : index
    %27 = vector.load %arg6[%c0_14, %c0_15] : memref<1x24xf32, #tpu.memory_space<vmem>>, vector<1x24xf32>
    %28 = vector.broadcast %27 : vector<1x24xf32> to vector<16x24xf32>
    %29 = arith.addf %26, %28 : vector<16x24xf32>
    %30 = vector.extract_strided_slice %29 {offsets = [0, 0], sizes = [16, 4], strides = [1, 1]} : vector<16x24xf32> to vector<16x4xf32>
    %31 = vector.extract_strided_slice %29 {offsets = [0, 4], sizes = [16, 4], strides = [1, 1]} : vector<16x24xf32> to vector<16x4xf32>
    %32 = tpu.concatenate %30, %31 in 0 : vector<16x4xf32>, vector<16x4xf32> -> vector<32x4xf32>
    %33 = vector.extract_strided_slice %29 {offsets = [0, 8], sizes = [16, 4], strides = [1, 1]} : vector<16x24xf32> to vector<16x4xf32>
    %34 = vector.extract_strided_slice %29 {offsets = [0, 12], sizes = [16, 4], strides = [1, 1]} : vector<16x24xf32> to vector<16x4xf32>
    %35 = tpu.concatenate %33, %34 in 0 : vector<16x4xf32>, vector<16x4xf32> -> vector<32x4xf32>
    %36 = vector.extract_strided_slice %29 {offsets = [0, 16], sizes = [16, 4], strides = [1, 1]} : vector<16x24xf32> to vector<16x4xf32>
    %37 = vector.extract_strided_slice %29 {offsets = [0, 20], sizes = [16, 4], strides = [1, 1]} : vector<16x24xf32> to vector<16x4xf32>
    %38 = tpu.concatenate %36, %37 in 0 : vector<16x4xf32>, vector<16x4xf32> -> vector<32x4xf32>
    %cst_16 = arith.constant 5.000000e-01 : f32
    %39 = vector.broadcast %cst_16 : f32 to vector<32x4xf32>
    %40 = arith.mulf %32, %39 : vector<32x4xf32>
    %41 = vector.shape_cast %40 : vector<32x4xf32> to vector<4x8x4xf32>
    %42 = vector.shape_cast %35 : vector<32x4xf32> to vector<4x8x4xf32>
    %43 = vector.shape_cast %38 : vector<32x4xf32> to vector<4x8x4xf32>
    %44 = arith.truncf %41 : vector<4x8x4xf32> to vector<4x8x4xbf16>
    %45 = arith.truncf %42 : vector<4x8x4xf32> to vector<4x8x4xbf16>
    "tpu.trace_start"() <{level = 10 : i32, message = "bqd,bkd->bqk"}> : () -> ()
    %cst_17 = arith.constant dense<0.000000e+00> : vector<4x8x8xf32>
    %46 = tpu.matmul %44, %45, %cst_17 {dimension_numbers = #tpu.dot_dimension_numbers<[2], [2], [1], [1], [0, 0, 0, 1, 1, 1], [0], [0]>} : vector<4x8x4xbf16>, vector<4x8x4xbf16>, vector<4x8x8xf32> -> vector<4x8x8xf32>
    "tpu.trace_stop"() : () -> ()
    %cst_18 = arith.constant dense<0xFF800000> : vector<4x8xf32>
    %47 = vector.multi_reduction <maximumf>, %46, %cst_18 [2] : vector<4x8x8xf32> to vector<4x8xf32>
    %48 = vector.shape_cast %47 : vector<4x8xf32> to vector<4x8x1xf32>
    %49 = vector.broadcast %48 : vector<4x8x1xf32> to vector<4x8x8xf32>
    %50 = arith.subf %46, %49 : vector<4x8x8xf32>
    %51 = math.exp %50 : vector<4x8x8xf32>
    %cst_19 = arith.constant dense<0.000000e+00> : vector<4x8xf32>
    %52 = vector.multi_reduction <add>, %51, %cst_19 [2] : vector<4x8x8xf32> to vector<4x8xf32>
    %53 = vector.shape_cast %52 : vector<4x8xf32> to vector<4x8x1xf32>
    %54 = tpu.reciprocal %53 {approx = true} : vector<4x8x1xf32> -> vector<4x8x1xf32>
    %55 = vector.broadcast %54 : vector<4x8x1xf32> to vector<4x8x8xf32>
    %56 = arith.mulf %51, %55 : vector<4x8x8xf32>
    %57 = arith.truncf %56 : vector<4x8x8xf32> to vector<4x8x8xbf16>
    %58 = arith.truncf %43 : vector<4x8x4xf32> to vector<4x8x4xbf16>
    "tpu.trace_start"() <{level = 10 : i32, message = "bqk,bkd->bqd"}> : () -> ()
    %cst_20 = arith.constant dense<0.000000e+00> : vector<4x8x4xf32>
    %59 = tpu.matmul %57, %58, %cst_20 {dimension_numbers = #tpu.dot_dimension_numbers<[2], [1], [1], [2], [0, 0, 0, 1, 1, 2], [0], [0]>} : vector<4x8x8xbf16>, vector<4x8x4xbf16>, vector<4x8x4xf32> -> vector<4x8x4xf32>
    "tpu.trace_stop"() : () -> ()
    %60 = vector.extract_strided_slice %59 {offsets = [0, 0, 0], sizes = [2, 8, 4], strides = [1, 1, 1]} : vector<4x8x4xf32> to vector<2x8x4xf32>
    %61 = vector.shape_cast %60 : vector<2x8x4xf32> to vector<16x4xf32>
    %c0_21 = arith.constant 0 : index
    %c0_22 = arith.constant 0 : index
    %62 = vector.load %arg15[%c0_21, %c0_22] : memref<16x8xf32, #tpu.memory_space<vmem>>, vector<16x4xf32>
    tpu.vector_store %arg15[%c0_21, %c0_22], %61 {strides = array<i32>} : memref<16x8xf32, #tpu.memory_space<vmem>>, vector<16x4xf32>,
    %63 = vector.extract_strided_slice %59 {offsets = [2, 0, 0], sizes = [2, 8, 4], strides = [1, 1, 1]} : vector<4x8x4xf32> to vector<2x8x4xf32>
    %64 = vector.shape_cast %63 : vector<2x8x4xf32> to vector<16x4xf32>
    %c0_23 = arith.constant 0 : index
    %c4 = arith.constant 4 : index
    %65 = vector.load %arg15[%c0_23, %c4] : memref<16x8xf32, #tpu.memory_space<vmem>>, vector<16x4xf32>
    tpu.vector_store %arg15[%c0_23, %c4], %64 {strides = array<i32>} : memref<16x8xf32, #tpu.memory_space<vmem>>, vector<16x4xf32>,
    %c0_24 = arith.constant 0 : index
    %c0_25 = arith.constant 0 : index
    %66 = vector.load %arg15[%c0_24, %c0_25] : memref<16x8xf32, #tpu.memory_space<vmem>>, vector<16x8xf32>
    %67 = arith.truncf %66 : vector<16x8xf32> to vector<16x8xbf16>
    %c0_26 = arith.constant 0 : index
    %c0_27 = arith.constant 0 : index
    %68 = vector.load %arg7[%c0_26, %c0_27] : memref<8x8xbf16, #tpu.memory_space<vmem>>, vector<8x8xbf16>
    %cst_28 = arith.constant dense<0.000000e+00> : vector<16x8xf32>
    %69 = tpu.matmul %67, %68, %cst_28 {dimension_numbers = #tpu.dot_dimension_numbers<[1], [0], [0], [1], [0, 0, 1, 1], [], []>} : vector<16x8xbf16>, vector<8x8xbf16>, vector<16x8xf32> -> vector<16x8xf32>
    %c0_29 = arith.constant 0 : index
    %c0_30 = arith.constant 0 : index
    %70 = vector.load %arg8[%c0_29, %c0_30] : memref<1x8xf32, #tpu.memory_space<vmem>>, vector<1x8xf32>
    %71 = vector.broadcast %70 : vector<1x8xf32> to vector<16x8xf32>
    %72 = arith.addf %69, %71 : vector<16x8xf32>
    %73 = arith.addf %0, %72 : vector<16x8xf32>
    %c0_31 = arith.constant 0 : index
    %c0_32 = arith.constant 0 : index
    %74 = vector.load %arg3[%c0_31, %c0_32] : memref<1x8xf32, #tpu.memory_space<vmem>>, vector<1x8xf32>
    %c0_33 = arith.constant 0 : index
    %c0_34 = arith.constant 0 : index
    %75 = vector.load %arg4[%c0_33, %c0_34] : memref<1x8xf32, #tpu.memory_space<vmem>>, vector<1x8xf32>
    %cst_35 = arith.constant dense<0.000000e+00> : vector<16xf32>
    %76 = vector.multi_reduction <add>, %73, %cst_35 [1] : vector<16x8xf32> to vector<16xf32>
    %77 = vector.shape_cast %76 : vector<16xf32> to vector<16x1xf32>
    %cst_36 = arith.constant 8.000000e+00 : f32
    %78 = vector.broadcast %cst_36 : f32 to vector<16x1xf32>
    %79 = arith.divf %77, %78 : vector<16x1xf32>
    %80 = vector.broadcast %79 : vector<16x1xf32> to vector<16x8xf32>
    %81 = arith.subf %73, %80 : vector<16x8xf32>
    %82 = arith.mulf %81, %81 : vector<16x8xf32>
    %cst_37 = arith.constant dense<0.000000e+00> : vector<16xf32>
    %83 = vector.multi_reduction <add>, %82, %cst_37 [1] : vector<16x8xf32> to vector<16xf32>
    %84 = vector.shape_cast %83 : vector<16xf32> to vector<16x1xf32>
    %cst_38 = arith.constant 8.000000e+00 : f32
    %85 = vector.broadcast %cst_38 : f32 to vector<16x1xf32>
    %86 = arith.divf %84, %85 : vector<16x1xf32>
    %cst_39 = arith.constant 9.99999974E-6 : f32
    %87 = vector.broadcast %cst_39 : f32 to vector<16x1xf32>
    %88 = arith.addf %86, %87 : vector<16x1xf32>
    %89 = math.rsqrt %88 : vector<16x1xf32>
    %90 = vector.broadcast %89 : vector<16x1xf32> to vector<16x8xf32>
    %91 = arith.mulf %81, %90 : vector<16x8xf32>
    %92 = vector.broadcast %74 : vector<1x8xf32> to vector<16x8xf32>
    %93 = arith.mulf %91, %92 : vector<16x8xf32>
    %94 = vector.broadcast %75 : vector<1x8xf32> to vector<16x8xf32>
    %95 = arith.addf %93, %94 : vector<16x8xf32>
    %96 = arith.truncf %95 : vector<16x8xf32> to vector<16x8xbf16>
    %c0_40 = arith.constant 0 : index
    %c0_41 = arith.constant 0 : index
    %97 = vector.load %arg9[%c0_40, %c0_41] : memref<8x32xbf16, #tpu.memory_space<vmem>>, vector<8x32xbf16>
    %cst_42 = arith.constant dense<0.000000e+00> : vector<16x32xf32>
    %98 = tpu.matmul %96, %97, %cst_42 {dimension_numbers = #tpu.dot_dimension_numbers<[1], [0], [0], [1], [0, 0, 1, 1], [], []>} : vector<16x8xbf16>, vector<8x32xbf16>, vector<16x32xf32> -> vector<16x32xf32>
    %c0_43 = arith.constant 0 : index
    %c0_44 = arith.constant 0 : index
    %99 = vector.load %arg10[%c0_43, %c0_44] : memref<1x32xf32, #tpu.memory_space<vmem>>, vector<1x32xf32>
    %100 = vector.broadcast %99 : vector<1x32xf32> to vector<16x32xf32>
    %101 = arith.addf %98, %100 : vector<16x32xf32>
    %cst_45 = arith.constant 5.000000e-01 : f32
    %102 = vector.broadcast %cst_45 : f32 to vector<16x32xf32>
    %103 = arith.mulf %102, %101 : vector<16x32xf32>
    %cst_46 = arith.constant 0.707106769 : f32
    %104 = vector.broadcast %cst_46 : f32 to vector<16x32xf32>
    %105 = arith.mulf %101, %104 : vector<16x32xf32>
    %106 = math.erf %105 : vector<16x32xf32>
    %cst_47 = arith.constant 1.000000e+00 : f32
    %107 = vector.broadcast %cst_47 : f32 to vector<16x32xf32>
    %108 = arith.addf %107, %106 : vector<16x32xf32>
    %109 = arith.mulf %103, %108 : vector<16x32xf32>
    %110 = arith.truncf %109 : vector<16x32xf32> to vector<16x32xbf16>
    %c0_48 = arith.constant 0 : index
    %c0_49 = arith.constant 0 : index
    %111 = vector.load %arg11[%c0_48, %c0_49] : memref<32x8xbf16, #tpu.memory_space<vmem>>, vector<32x8xbf16>
    %cst_50 = arith.constant dense<0.000000e+00> : vector<16x8xf32>
    %112 = tpu.matmul %110, %111, %cst_50 {dimension_numbers = #tpu.dot_dimension_numbers<[1], [0], [0], [1], [0, 0, 1, 1], [], []>} : vector<16x32xbf16>, vector<32x8xbf16>, vector<16x8xf32> -> vector<16x8xf32>
    %c0_51 = arith.constant 0 : index
    %c0_52 = arith.constant 0 : index
    %113 = vector.load %arg12[%c0_51, %c0_52] : memref<1x8xf32, #tpu.memory_space<vmem>>, vector<1x8xf32>
    %114 = vector.broadcast %113 : vector<1x8xf32> to vector<16x8xf32>
    %115 = arith.addf %112, %114 : vector<16x8xf32>
    %116 = arith.addf %73, %115 : vector<16x8xf32>
    %c0_53 = arith.constant 0 : index
    %c0_54 = arith.constant 0 : index
    %117 = vector.load %arg13[%c0_53, %c0_54] : memref<16x8xf32, #tpu.memory_space<vmem>>, vector<16x8xf32>
    tpu.vector_store %arg13[%c0_53, %c0_54], %116 {strides = array<i32>} : memref<16x8xf32, #tpu.memory_space<vmem>>, vector<16x8xf32>,
    return
  }
}

</mosaic_0001>

<llo_original>
// kernel: tpu_custom_call.1
$region0: #{tpu_custom_call.1}
  #allocation0 [shape = 'u32[]', space=smem, size = 0x4, offset = 0x4, fixed_abs, tag = 'smem constant byte address 0x4 - core index']
  #allocation1 [shape = 'u32[144,128]{1,0:T(1,128)}', space=vmem, size = 0x12000, scoped, tag = 'internal scratch']
  #allocation2 [shape = 'f32[16,8]{1,0:T(8,128)}', space=vmem, size = 0x2000, scoped, tag = 'scratch operand']
  %s0 = inlined_call_operand.vmem [shape: f32[16,8], index: 0, kind: input, shape index: {}]
  %s1 = inlined_call_operand.vmem [shape: f32[1,8], index: 1, kind: input, shape index: {}]
  %s2 = inlined_call_operand.vmem [shape: f32[1,8], index: 2, kind: input, shape index: {}]
  %s3 = inlined_call_operand.vmem [shape: f32[1,8], index: 3, kind: input, shape index: {}]
  %s4 = inlined_call_operand.vmem [shape: f32[1,8], index: 4, kind: input, shape index: {}]
  %s5 = inlined_call_operand.vmem [shape: bf16[8,24], index: 5, kind: input, shape index: {}]
  %s6 = inlined_call_operand.vmem [shape: f32[1,24], index: 6, kind: input, shape index: {}]
  %s7 = inlined_call_operand.vmem [shape: bf16[8,8], index: 7, kind: input, shape index: {}]
  %s8 = inlined_call_operand.vmem [shape: f32[1,8], index: 8, kind: input, shape index: {}]
  %s9 = inlined_call_operand.vmem [shape: bf16[8,32], index: 9, kind: input, shape index: {}]
  %s10 = inlined_call_operand.vmem [shape: f32[1,32], index: 10, kind: input, shape index: {}]
  %s11 = inlined_call_operand.vmem [shape: bf16[32,8], index: 11, kind: input, shape index: {}]
  %s12 = inlined_call_operand.vmem [shape: f32[1,8], index: 12, kind: input, shape index: {}]
  %s13 = inlined_call_operand.vmem [shape: f32[16,8], index: 13, kind: output, shape index: {0}]
  %s14 = inlined_call_operand.vmem [shape: f32[16,8], index: 14, kind: output, shape index: {1}]
  %15 = xla_tuple %s13, %s14
  %s16 = sld [smem:[#allocation0]]
  $region70: #{tpu_custom_call.1} parent=0
    _
  %s18 = ssub.s32 1, %s16
  %s19 = scalar_select 0, %s18, %s16
  // Predicated region
  $region2: #{tpu_custom_call.1} parent=0 // pred_check
    _
  $region3: #{tpu_custom_call.1} parent=0 // pred_check_branch
    %21 = sbr.rel (0) target = $region5
  $region4: #{tpu_custom_call.1} parent=0 // pred_region
    _
  $region5: #{tpu_custom_call.1} parent=0 // pred_fallthru
    _
  // Predicated region
  $region6: #{tpu_custom_call.1} parent=0 // pred_check
    _
  $region7: #{tpu_custom_call.1} parent=0 // pred_check_branch
    %23 = sbr.rel (0) target = $region9
  $region8: #{tpu_custom_call.1} parent=0 // pred_region
    _
  $region9: #{tpu_custom_call.1} parent=0 // pred_fallthru
    _
  // Predicated region
  $region10: #{tpu_custom_call.1} parent=0 // pred_check
    _
  $region11: #{tpu_custom_call.1} parent=0 // pred_check_branch
    %25 = sbr.rel (0) target = $region13
  $region12: #{tpu_custom_call.1} parent=0 // pred_region
    _
  $region13: #{tpu_custom_call.1} parent=0 // pred_fallthru
    _
  // Predicated region
  $region14: #{tpu_custom_call.1} parent=0 // pred_check
    _
  $region15: #{tpu_custom_call.1} parent=0 // pred_check_branch
    %27 = sbr.rel (0) target = $region17
  $region16: #{tpu_custom_call.1} parent=0 // pred_region
    _
  $region17: #{tpu_custom_call.1} parent=0 // pred_fallthru
    _
  // Predicated region
  $region18: #{tpu_custom_call.1} parent=0 // pred_check
    _
  $region19: #{tpu_custom_call.1} parent=0 // pred_check_branch
    %29 = sbr.rel (0) target = $region21
  $region20: #{tpu_custom_call.1} parent=0 // pred_region
    _
  $region21: #{tpu_custom_call.1} parent=0 // pred_fallthru
    _
  // Predicated region
  $region22: #{tpu_custom_call.1} parent=0 // pred_check
    _
  $region23: #{tpu_custom_call.1} parent=0 // pred_check_branch
    %31 = sbr.rel (0) target = $region25
  $region24: #{tpu_custom_call.1} parent=0 // pred_region
    _
  $region25: #{tpu_custom_call.1} parent=0 // pred_fallthru
    _
  // Predicated region
  $region26: #{tpu_custom_call.1} parent=0 // pred_check
    _
  $region27: #{tpu_custom_call.1} parent=0 // pred_check_branch
    %33 = sbr.rel (0) target = $region29
  $region28: #{tpu_custom_call.1} parent=0 // pred_region
    _
  $region29: #{tpu_custom_call.1} parent=0 // pred_fallthru
    _
  // Predicated region
  $region30: #{tpu_custom_call.1} parent=0 // pred_check
    _
  $region31: #{tpu_custom_call.1} parent=0 // pred_check_branch
    %35 = sbr.rel (0) target = $region33
  $region32: #{tpu_custom_call.1} parent=0 // pred_region
    _
  $region33: #{tpu_custom_call.1} parent=0 // pred_fallthru
    _
  // Predicated region
  $region34: #{tpu_custom_call.1} parent=0 // pred_check
    _
  $region35: #{tpu_custom_call.1} parent=0 // pred_check_branch
    %37 = sbr.rel (0) target = $region37
  $region36: #{tpu_custom_call.1} parent=0 // pred_region
    _
  $region37: #{tpu_custom_call.1} parent=0 // pred_fallthru
    _
  // Predicated region
  $region38: #{tpu_custom_call.1} parent=0 // pred_check
    _
  $region39: #{tpu_custom_call.1} parent=0 // pred_check_branch
    %39 = sbr.rel (0) target = $region41
  $region40: #{tpu_custom_call.1} parent=0 // pred_region
    _
  $region41: #{tpu_custom_call.1} parent=0 // pred_fallthru
    _
  // Predicated region
  $region42: #{tpu_custom_call.1} parent=0 // pred_check
    _
  $region43: #{tpu_custom_call.1} parent=0 // pred_check_branch
    %41 = sbr.rel (0) target = $region45
  $region44: #{tpu_custom_call.1} parent=0 // pred_region
    _
  $region45: #{tpu_custom_call.1} parent=0 // pred_fallthru
    _
  // Predicated region
  $region46: #{tpu_custom_call.1} parent=0 // pred_check
    _
  $region47: #{tpu_custom_call.1} parent=0 // pred_check_branch
    %43 = sbr.rel (0) target = $region49
  $region48: #{tpu_custom_call.1} parent=0 // pred_region
    _
  $region49: #{tpu_custom_call.1} parent=0 // pred_fallthru
    _
  // Predicated region
  $region50: #{tpu_custom_call.1} parent=0 // pred_check
    _
  $region51: #{tpu_custom_call.1} parent=0 // pred_check_branch
    %45 = sbr.rel (0) target = $region53
  $region52: #{tpu_custom_call.1} parent=0 // pred_region
    _
  $region53: #{tpu_custom_call.1} parent=0 // pred_fallthru
    _
  %v47 = vld [vmem:[%s0] sm:$0xff]
  %v48 = vld [vmem:[%s0 + $0x8] sm:$0xff]
  %v49 = vld [vmem:[%s1] sm:$0x1]
  %v50 = vld [vmem:[%s2] sm:$0x1]
  %vm51 = vcmask 64512
  %v52 = vsel %vm51, %v47, 0.0
  %53 = vadd.xlane.f32.xlu0 %v52
  %v54 = vpop.xlane.xlu0 %53
  %v55 = vsel %vm51, %v48, 0.0
  %56 = vadd.xlane.f32.xlu0 %v55
  %v57 = vpop.xlane.xlu0 %56
  %v58 = vrcp.pop 8.0
  %v59 = vmul.f32 %v54, %v58
  %v60 = vmul.f32 %v57, %v58
  %v61 = vsub.f32 %v47, %v59
  %v62 = vsub.f32 %v48, %v60
  %v63 = vmul.f32 %v61, %v61
  %v64 = vmul.f32 %v62, %v62
  %v65 = vsel %vm51, %v63, 0.0
  %66 = vadd.xlane.f32.xlu0 %v65
  %v67 = vpop.xlane.xlu0 %66
  %v68 = vsel %vm51, %v64, 0.0
  %69 = vadd.xlane.f32.xlu0 %v68
  %v70 = vpop.xlane.xlu0 %69
  %v71 = vmul.f32 %v67, %v58
  %v72 = vmul.f32 %v70, %v58
  %v73 = vadd.f32 %v71, 1e-05
  %v74 = vadd.f32 %v72, 1e-05
  %v75 = vrsqrt.pop %v73
  %v76 = vrsqrt.pop %v74
  %v77 = vmul.f32 %v61, %v75
  %v78 = vmul.f32 %v62, %v76
  %v80 = vlaneseq
  %v81 = vshrl.u32 %v80, 7
  %v82 = vsub.s32 0, %v81
  %v83 = vrot.slane %v49, %v82
  %v85 = vmul.f32 %v77, %v83
  %v86 = vmul.f32 %v78, %v83
  %v88 = vlaneseq
  %v89 = vshrl.u32 %v88, 7
  %v90 = vsub.s32 0, %v89
  %v91 = vrot.slane %v50, %v90
  %v93 = vadd.f32 %v85, %v91
  %v94 = vadd.f32 %v86, %v91
  %95 = vst.msk [vmem:[%s14] sm:$0xff] %vm51, %v93
  %96 = vst.msk [vmem:[%s14 + $0x8] sm:$0xff] %vm51, %v94
  %v97 = vpack.c.bf16 %v94, %v93
  %v98 = vld [vmem:[%s5] sm:$0xf]
  %v99 = vld [vmem:[%s6] sm:$0x1]
  %v101 = vlaneseq
  %v102 = vshrl.u32 %v101, 7
  %v103 = vsub.s32 0, %v102
  %v104 = vrot.slane %v99, %v103
  %v107 = vsel %vm51, %v97, 0
  %vm109 = vcmask 1043456
  %v111 = vsel %vm109, %v98, 0
  %113 = vmatprep.subr.bf16.mxu0 0
  %114 = vmatpush1.bf16.msra.mxu0 0
  %115 = vmatprep.subr.bf16.mxu0 0
  %116 = vmatpush1.bf16.msra.mxu0 0
  %117 = vmatprep.subr.bf16.mxu0 0
  %118 = vmatpush1.bf16.msra.mxu0 0
  %119 = vmatprep.subr.bf16.mxu0 0
  %120 = vmatpush1.bf16.msra.mxu0 0
  %121 = vmatprep.subr.bf16.mxu0 0
  %122 = vmatpush1.bf16.msra.mxu0 0
  %123 = vmatprep.subr.bf16.mxu0 0
  %124 = vmatpush1.bf16.msra.mxu0 0
  %125 = vmatprep.subr.bf16.mxu0 0
  %126 = vmatpush1.bf16.msra.mxu0 0
  %127 = vmatprep.subr.bf16.mxu0 0
  %128 = vmatpush1.bf16.msra.mxu0 %v111
  %129 = vmatprep.subr.bf16.mxu0 0
  %130 = vmatpush2.bf16.msra.mxu0 0
  %131 = vmatprep.subr.bf16.mxu0 0
  %132 = vmatpush2.bf16.msra.mxu0 0
  %133 = vmatprep.subr.bf16.mxu0 0
  %134 = vmatpush2.bf16.msra.mxu0 0
  %135 = vmatprep.subr.bf16.mxu0 0
  %136 = vmatpush2.bf16.msra.mxu0 0
  %137 = vmatprep.subr.bf16.mxu0 0
  %138 = vmatpush2.bf16.msra.mxu0 0
  %139 = vmatprep.subr.bf16.mxu0 0
  %140 = vmatpush2.bf16.msra.mxu0 0
  %141 = vmatprep.subr.bf16.mxu0 0
  %142 = vmatpush2.bf16.msra.mxu0 0
  %143 = vmatprep.subr.bf16.mxu0 0
  %144 = vmatpush2.bf16.msra.mxu0 0
  %145 = vmatprep.mubr.bf16.mxu0 0
  %146 = vmatmul.mubr.bf16.gmra.mxu0 %v107
  %v147 = vpop.f32.mrf.mxu0
  %v148 = vadd.f32 %v104, %v147
  %v149 = vpop.f32.mrf.mxu0
  %v150 = vpop.f32.mrf.mxu0
  %v151 = vadd.f32 %v104, %v150
  %v152 = vpop.f32.mrf.mxu0
  %153 = vdwg.mxu0
  %156 = vrot.lane.b32.xlu0 %v148, 124
  %v157 = vpop.permute.xlu0 %156
  %158 = vrot.lane.b32.xlu0 %v151, 124
  %v159 = vpop.permute.xlu0 %158
  %v162 = vmul.f32 %v148, 0.5
  %v163 = vmul.f32 %v151, 0.5
  %v164 = vmul.f32 %v157, 0.5
  %v165 = vmul.f32 %v159, 0.5
  %v166 = vpack.c.bf16 %v162, %v162
  %v167 = vpack.c.bf16 %v163, %v163
  %v168 = vpack.c.bf16 %v164, %v164
  %v169 = vpack.c.bf16 %v165, %v165
  %v170 = vpack.c.bf16 %v148, %v148
  %v171 = vpack.c.bf16 %v151, %v151
  %v172 = vpack.c.bf16 %v157, %v157
  %v173 = vpack.c.bf16 %v159, %v159
  %175 = vrot.lane.b32.xlu0 %v170, 120
  %v176 = vpop.permute.xlu0 %175
  %vm177 = vcmask 31744
  %v179 = vsel %vm177, %v166, 0
  %v182 = vsel %vm177, %v176, 0
  %184 = vmatprep.subr.bf16.mxu0 0
  %185 = vmatpush1.bf16.xpose.msra.mxu0 0
  %186 = vmatprep.subr.bf16.mxu0 0
  %187 = vmatpush1.bf16.xpose.msra.mxu0 0
  %188 = vmatprep.subr.bf16.mxu0 0
  %189 = vmatpush1.bf16.xpose.msra.mxu0 0
  %190 = vmatprep.subr.bf16.mxu0 0
  %191 = vmatpush1.bf16.xpose.msra.mxu0 0
  %192 = vmatprep.subr.bf16.mxu0 0
  %193 = vmatpush1.bf16.xpose.msra.mxu0 0
  %194 = vmatprep.subr.bf16.mxu0 0
  %195 = vmatpush1.bf16.xpose.msra.mxu0 0
  %196 = vmatprep.subr.bf16.mxu0 0
  %197 = vmatpush1.bf16.xpose.msra.mxu0 0
  %198 = vmatprep.subr.bf16.mxu0 0
  %199 = vmatpush1.bf16.xpose.msra.mxu0 %v182
  %200 = vmatprep.subr.bf16.mxu0 0
  %201 = vmatpush2.bf16.xpose.msra.mxu0 0
  %202 = vmatprep.subr.bf16.mxu0 0
  %203 = vmatpush2.bf16.xpose.msra.mxu0 0
  %204 = vmatprep.subr.bf16.mxu0 0
  %205 = vmatpush2.bf16.xpose.msra.mxu0 0
  %206 = vmatprep.subr.bf16.mxu0 0
  %207 = vmatpush2.bf16.xpose.msra.mxu0 0
  %208 = vmatprep.subr.bf16.mxu0 0
  %209 = vmatpush2.bf16.xpose.msra.mxu0 0
  %210 = vmatprep.subr.bf16.mxu0 0
  %211 = vmatpush2.bf16.xpose.msra.mxu0 0
  %212 = vmatprep.subr.bf16.mxu0 0
  %213 = vmatpush2.bf16.xpose.msra.mxu0 0
  %214 = vmatprep.subr.bf16.mxu0 0
  %215 = vmatpush2.bf16.xpose.msra.mxu0 0
  %216 = vmatprep.mubr.bf16.mxu0 0
  %217 = vmatmul.mubr.bf16.gmra.mxu0 %v179
  %v218 = vpop.f32.mrf.mxu0
  %v219 = vadd.f32 0.0, %v218
  %v220 = vpop.f32.mrf.mxu0
  %v221 = vpop.f32.mrf.mxu0
  %v222 = vpop.f32.mrf.mxu0
  %223 = vdwg.mxu0
  %225 = vrot.lane.b32.xlu0 %v171, 120
  %v226 = vpop.permute.xlu0 %225
  %v228 = vsel %vm177, %v167, 0
  %v231 = vsel %vm177, %v226, 0
  %233 = vmatprep.subr.bf16.mxu0 0
  %234 = vmatpush1.bf16.xpose.msra.mxu0 0
  %235 = vmatprep.subr.bf16.mxu0 0
  %236 = vmatpush1.bf16.xpose.msra.mxu0 0
  %237 = vmatprep.subr.bf16.mxu0 0
  %238 = vmatpush1.bf16.xpose.msra.mxu0 0
  %239 = vmatprep.subr.bf16.mxu0 0
  %240 = vmatpush1.bf16.xpose.msra.mxu0 0
  %241 = vmatprep.subr.bf16.mxu0 0
  %242 = vmatpush1.bf16.xpose.msra.mxu0 0
  %243 = vmatprep.subr.bf16.mxu0 0
  %244 = vmatpush1.bf16.xpose.msra.mxu0 0
  %245 = vmatprep.subr.bf16.mxu0 0
  %246 = vmatpush1.bf16.xpose.msra.mxu0 0
  %247 = vmatprep.subr.bf16.mxu0 0
  %248 = vmatpush1.bf16.xpose.msra.mxu0 %v231
  %249 = vmatprep.subr.bf16.mxu0 0
  %250 = vmatpush2.bf16.xpose.msra.mxu0 0
  %251 = vmatprep.subr.bf16.mxu0 0
  %252 = vmatpush2.bf16.xpose.msra.mxu0 0
  %253 = vmatprep.subr.bf16.mxu0 0
  %254 = vmatpush2.bf16.xpose.msra.mxu0 0
  %255 = vmatprep.subr.bf16.mxu0 0
  %256 = vmatpush2.bf16.xpose.msra.mxu0 0
  %257 = vmatprep.subr.bf16.mxu0 0
  %258 = vmatpush2.bf16.xpose.msra.mxu0 0
  %259 = vmatprep.subr.bf16.mxu0 0
  %260 = vmatpush2.bf16.xpose.msra.mxu0 0
  %261 = vmatprep.subr.bf16.mxu0 0
  %262 = vmatpush2.bf16.xpose.msra.mxu0 0
  %263 = vmatprep.subr.bf16.mxu0 0
  %264 = vmatpush2.bf16.xpose.msra.mxu0 0
  %265 = vmatprep.mubr.bf16.mxu0 0
  %266 = vmatmul.mubr.bf16.gmra.mxu0 %v228
  %v267 = vpop.f32.mrf.mxu0
  %v268 = vadd.f32 0.0, %v267
  %v269 = vpop.f32.mrf.mxu0
  %v270 = vpop.f32.mrf.mxu0
  %v271 = vpop.f32.mrf.mxu0
  %272 = vdwg.mxu0
  %274 = vrot.lane.b32.xlu0 %v172, 120
  %v275 = vpop.permute.xlu0 %274
  %v277 = vsel %vm177, %v168, 0
  %v280 = vsel %vm177, %v275, 0
  %282 = vmatprep.subr.bf16.mxu0 0
  %283 = vmatpush1.bf16.xpose.msra.mxu0 0
  %284 = vmatprep.subr.bf16.mxu0 0
  %285 = vmatpush1.bf16.xpose.msra.mxu0 0
  %286 = vmatprep.subr.bf16.mxu0 0
  %287 = vmatpush1.bf16.xpose.msra.mxu0 0
  %288 = vmatprep.subr.bf16.mxu0 0
  %289 = vmatpush1.bf16.xpose.msra.mxu0 0
  %290 = vmatprep.subr.bf16.mxu0 0
  %291 = vmatpush1.bf16.xpose.msra.mxu0 0
  %292 = vmatprep.subr.bf16.mxu0 0
  %293 = vmatpush1.bf16.xpose.msra.mxu0 0
  %294 = vmatprep.subr.bf16.mxu0 0
  %295 = vmatpush1.bf16.xpose.msra.mxu0 0
  %296 = vmatprep.subr.bf16.mxu0 0
  %297 = vmatpush1.bf16.xpose.msra.mxu0 %v280
  %298 = vmatprep.subr.bf16.mxu0 0
  %299 = vmatpush2.bf16.xpose.msra.mxu0 0
  %300 = vmatprep.subr.bf16.mxu0 0
  %301 = vmatpush2.bf16.xpose.msra.mxu0 0
  %302 = vmatprep.subr.bf16.mxu0 0
  %303 = vmatpush2.bf16.xpose.msra.mxu0 0
  %304 = vmatprep.subr.bf16.mxu0 0
  %305 = vmatpush2.bf16.xpose.msra.mxu0 0
  %306 = vmatprep.subr.bf16.mxu0 0
  %307 = vmatpush2.bf16.xpose.msra.mxu0 0
  %308 = vmatprep.subr.bf16.mxu0 0
  %309 = vmatpush2.bf16.xpose.msra.mxu0 0
  %310 = vmatprep.subr.bf16.mxu0 0
  %311 = vmatpush2.bf16.xpose.msra.mxu0 0
  %312 = vmatprep.subr.bf16.mxu0 0
  %313 = vmatpush2.bf16.xpose.msra.mxu0 0
  %314 = vmatprep.mubr.bf16.mxu0 0
  %315 = vmatmul.mubr.bf16.gmra.mxu0 %v277
  %v316 = vpop.f32.mrf.mxu0
  %v317 = vadd.f32 0.0, %v316
  %v318 = vpop.f32.mrf.mxu0
  %v319 = vpop.f32.mrf.mxu0
  %v320 = vpop.f32.mrf.mxu0
  %321 = vdwg.mxu0
  %323 = vrot.lane.b32.xlu0 %v173, 120
  %v324 = vpop.permute.xlu0 %323
  %v326 = vsel %vm177, %v169, 0
  %v329 = vsel %vm177, %v324, 0
  %331 = vmatprep.subr.bf16.mxu0 0
  %332 = vmatpush1.bf16.xpose.msra.mxu0 0
  %333 = vmatprep.subr.bf16.mxu0 0
  %334 = vmatpush1.bf16.xpose.msra.mxu0 0
  %335 = vmatprep.subr.bf16.mxu0 0
  %336 = vmatpush1.bf16.xpose.msra.mxu0 0
  %337 = vmatprep.subr.bf16.mxu0 0
  %338 = vmatpush1.bf16.xpose.msra.mxu0 0
  %339 = vmatprep.subr.bf16.mxu0 0
  %340 = vmatpush1.bf16.xpose.msra.mxu0 0
  %341 = vmatprep.subr.bf16.mxu0 0
  %342 = vmatpush1.bf16.xpose.msra.mxu0 0
  %343 = vmatprep.subr.bf16.mxu0 0
  %344 = vmatpush1.bf16.xpose.msra.mxu0 0
  %345 = vmatprep.subr.bf16.mxu0 0
  %346 = vmatpush1.bf16.xpose.msra.mxu0 %v329
  %347 = vmatprep.subr.bf16.mxu0 0
  %348 = vmatpush2.bf16.xpose.msra.mxu0 0
  %349 = vmatprep.subr.bf16.mxu0 0
  %350 = vmatpush2.bf16.xpose.msra.mxu0 0
  %351 = vmatprep.subr.bf16.mxu0 0
  %352 = vmatpush2.bf16.xpose.msra.mxu0 0
  %353 = vmatprep.subr.bf16.mxu0 0
  %354 = vmatpush2.bf16.xpose.msra.mxu0 0
  %355 = vmatprep.subr.bf16.mxu0 0
  %356 = vmatpush2.bf16.xpose.msra.mxu0 0
  %357 = vmatprep.subr.bf16.mxu0 0
  %358 = vmatpush2.bf16.xpose.msra.mxu0 0
  %359 = vmatprep.subr.bf16.mxu0 0
  %360 = vmatpush2.bf16.xpose.msra.mxu0 0
  %361 = vmatprep.subr.bf16.mxu0 0
  %362 = vmatpush2.bf16.xpose.msra.mxu0 0
  %363 = vmatprep.mubr.bf16.mxu0 0
  %364 = vmatmul.mubr.bf16.gmra.mxu0 %v326
  %v365 = vpop.f32.mrf.mxu0
  %v366 = vadd.f32 0.0, %v365
  %v367 = vpop.f32.mrf.mxu0
  %v368 = vpop.f32.mrf.mxu0
  %v369 = vpop.f32.mrf.mxu0
  %370 = vdwg.mxu0
  %v371 = vsel %vm51, %v219, -inf
  %372 = vmax.xlane.f32.xlu0 %v371
  %v373 = vpop.xlane.xlu0 %372
  %v374 = vsel %vm51, %v268, -inf
  %375 = vmax.xlane.f32.xlu0 %v374
  %v376 = vpop.xlane.xlu0 %375
  %v377 = vsel %vm51, %v317, -inf
  %378 = vmax.xlane.f32.xlu0 %v377
  %v379 = vpop.xlane.xlu0 %378
  %v380 = vsel %vm51, %v366, -inf
  %381 = vmax.xlane.f32.xlu0 %v380
  %v382 = vpop.xlane.xlu0 %381
  %v383 = vsub.f32 %v219, %v373
  %v384 = vsub.f32 %v268, %v376
  %v385 = vsub.f32 %v317, %v379
  %v386 = vsub.f32 %v366, %v382
  %v387 = vmul.f32 %v383, 1.442695
  %v388 = vpow.pop %v387
  %v389 = vmul.f32 %v384, 1.442695
  %v390 = vpow.pop %v389
  %v391 = vmul.f32 %v385, 1.442695
  %v392 = vpow.pop %v391
  %v393 = vmul.f32 %v386, 1.442695
  %v394 = vpow.pop %v393
  %v395 = vsel %vm51, %v388, 0.0
  %396 = vadd.xlane.f32.xlu0 %v395
  %v397 = vpop.xlane.xlu0 %396
  %v398 = vsel %vm51, %v390, 0.0
  %399 = vadd.xlane.f32.xlu0 %v398
  %v400 = vpop.xlane.xlu0 %399
  %v401 = vsel %vm51, %v392, 0.0
  %402 = vadd.xlane.f32.xlu0 %v401
  %v403 = vpop.xlane.xlu0 %402
  %v404 = vsel %vm51, %v394, 0.0
  %405 = vadd.xlane.f32.xlu0 %v404
  %v406 = vpop.xlane.xlu0 %405
  %v407 = vrcp.pop %v397
  %v408 = vrcp.pop %v400
  %v409 = vrcp.pop %v403
  %v410 = vrcp.pop %v406
  %v411 = vmul.f32 %v388, %v407
  %v412 = vmul.f32 %v390, %v408
  %v413 = vmul.f32 %v392, %v409
  %v414 = vmul.f32 %v394, %v410
  %v415 = vpack.c.bf16 %v411, %v411
  %v416 = vpack.c.bf16 %v412, %v412
  %v417 = vpack.c.bf16 %v413, %v413
  %v418 = vpack.c.bf16 %v414, %v414
  %419 = vrot.lane.b32.xlu0 %v170, 112
  %v420 = vpop.permute.xlu0 %419
  %v422 = vsel %vm51, %v415, 0
  %v425 = vsel %vm109, %v420, 0
  %427 = vmatprep.subr.bf16.mxu0 0
  %428 = vmatpush1.bf16.msra.mxu0 0
  %429 = vmatprep.subr.bf16.mxu0 0
  %430 = vmatpush1.bf16.msra.mxu0 0
  %431 = vmatprep.subr.bf16.mxu0 0
  %432 = vmatpush1.bf16.msra.mxu0 0
  %433 = vmatprep.subr.bf16.mxu0 0
  %434 = vmatpush1.bf16.msra.mxu0 0
  %435 = vmatprep.subr.bf16.mxu0 0
  %436 = vmatpush1.bf16.msra.mxu0 0
  %437 = vmatprep.subr.bf16.mxu0 0
  %438 = vmatpush1.bf16.msra.mxu0 0
  %439 = vmatprep.subr.bf16.mxu0 0
  %440 = vmatpush1.bf16.msra.mxu0 0
  %441 = vmatprep.subr.bf16.mxu0 0
  %442 = vmatpush1.bf16.msra.mxu0 %v425
  %443 = vmatprep.subr.bf16.mxu0 0
  %444 = vmatpush2.bf16.msra.mxu0 0
  %445 = vmatprep.subr.bf16.mxu0 0
  %446 = vmatpush2.bf16.msra.mxu0 0
  %447 = vmatprep.subr.bf16.mxu0 0
  %448 = vmatpush2.bf16.msra.mxu0 0
  %449 = vmatprep.subr.bf16.mxu0 0
  %450 = vmatpush2.bf16.msra.mxu0 0
  %451 = vmatprep.subr.bf16.mxu0 0
  %452 = vmatpush2.bf16.msra.mxu0 0
  %453 = vmatprep.subr.bf16.mxu0 0
  %454 = vmatpush2.bf16.msra.mxu0 0
  %455 = vmatprep.subr.bf16.mxu0 0
  %456 = vmatpush2.bf16.msra.mxu0 0
  %457 = vmatprep.subr.bf16.mxu0 0
  %458 = vmatpush2.bf16.msra.mxu0 0
  %459 = vmatprep.mubr.bf16.mxu0 0
  %460 = vmatmul.mubr.bf16.gmra.mxu0 %v422
  %v461 = vpop.f32.mrf.mxu0
  %v462 = vadd.f32 0.0, %v461
  %v463 = vpop.f32.mrf.mxu0
  %v464 = vpop.f32.mrf.mxu0
  %v465 = vpop.f32.mrf.mxu0
  %466 = vdwg.mxu0
  %467 = vrot.lane.b32.xlu0 %v171, 112
  %v468 = vpop.permute.xlu0 %467
  %v470 = vsel %vm51, %v416, 0
  %v473 = vsel %vm109, %v468, 0
  %475 = vmatprep.subr.bf16.mxu0 0
  %476 = vmatpush1.bf16.msra.mxu0 0
  %477 = vmatprep.subr.bf16.mxu0 0
  %478 = vmatpush1.bf16.msra.mxu0 0
  %479 = vmatprep.subr.bf16.mxu0 0
  %480 = vmatpush1.bf16.msra.mxu0 0
  %481 = vmatprep.subr.bf16.mxu0 0
  %482 = vmatpush1.bf16.msra.mxu0 0
  %483 = vmatprep.subr.bf16.mxu0 0
  %484 = vmatpush1.bf16.msra.mxu0 0
  %485 = vmatprep.subr.bf16.mxu0 0
  %486 = vmatpush1.bf16.msra.mxu0 0
  %487 = vmatprep.subr.bf16.mxu0 0
  %488 = vmatpush1.bf16.msra.mxu0 0
  %489 = vmatprep.subr.bf16.mxu0 0
  %490 = vmatpush1.bf16.msra.mxu0 %v473
  %491 = vmatprep.subr.bf16.mxu0 0
  %492 = vmatpush2.bf16.msra.mxu0 0
  %493 = vmatprep.subr.bf16.mxu0 0
  %494 = vmatpush2.bf16.msra.mxu0 0
  %495 = vmatprep.subr.bf16.mxu0 0
  %496 = vmatpush2.bf16.msra.mxu0 0
  %497 = vmatprep.subr.bf16.mxu0 0
  %498 = vmatpush2.bf16.msra.mxu0 0
  %499 = vmatprep.subr.bf16.mxu0 0
  %500 = vmatpush2.bf16.msra.mxu0 0
  %501 = vmatprep.subr.bf16.mxu0 0
  %502 = vmatpush2.bf16.msra.mxu0 0
  %503 = vmatprep.subr.bf16.mxu0 0
  %504 = vmatpush2.bf16.msra.mxu0 0
  %505 = vmatprep.subr.bf16.mxu0 0
  %506 = vmatpush2.bf16.msra.mxu0 0
  %507 = vmatprep.mubr.bf16.mxu0 0
  %508 = vmatmul.mubr.bf16.gmra.mxu0 %v470
  %v509 = vpop.f32.mrf.mxu0
  %v510 = vadd.f32 0.0, %v509
  %v511 = vpop.f32.mrf.mxu0
  %v512 = vpop.f32.mrf.mxu0
  %v513 = vpop.f32.mrf.mxu0
  %514 = vdwg.mxu0
  %515 = vrot.lane.b32.xlu0 %v172, 112
  %v516 = vpop.permute.xlu0 %515
  %v518 = vsel %vm51, %v417, 0
  %v521 = vsel %vm109, %v516, 0
  %523 = vmatprep.subr.bf16.mxu0 0
  %524 = vmatpush1.bf16.msra.mxu0 0
  %525 = vmatprep.subr.bf16.mxu0 0
  %526 = vmatpush1.bf16.msra.mxu0 0
  %527 = vmatprep.subr.bf16.mxu0 0
  %528 = vmatpush1.bf16.msra.mxu0 0
  %529 = vmatprep.subr.bf16.mxu0 0
  %530 = vmatpush1.bf16.msra.mxu0 0
  %531 = vmatprep.subr.bf16.mxu0 0
  %532 = vmatpush1.bf16.msra.mxu0 0
  %533 = vmatprep.subr.bf16.mxu0 0
  %534 = vmatpush1.bf16.msra.mxu0 0
  %535 = vmatprep.subr.bf16.mxu0 0
  %536 = vmatpush1.bf16.msra.mxu0 0
  %537 = vmatprep.subr.bf16.mxu0 0
  %538 = vmatpush1.bf16.msra.mxu0 %v521
  %539 = vmatprep.subr.bf16.mxu0 0
  %540 = vmatpush2.bf16.msra.mxu0 0
  %541 = vmatprep.subr.bf16.mxu0 0
  %542 = vmatpush2.bf16.msra.mxu0 0
  %543 = vmatprep.subr.bf16.mxu0 0
  %544 = vmatpush2.bf16.msra.mxu0 0
  %545 = vmatprep.subr.bf16.mxu0 0
  %546 = vmatpush2.bf16.msra.mxu0 0
  %547 = vmatprep.subr.bf16.mxu0 0
  %548 = vmatpush2.bf16.msra.mxu0 0
  %549 = vmatprep.subr.bf16.mxu0 0
  %550 = vmatpush2.bf16.msra.mxu0 0
  %551 = vmatprep.subr.bf16.mxu0 0
  %552 = vmatpush2.bf16.msra.mxu0 0
  %553 = vmatprep.subr.bf16.mxu0 0
  %554 = vmatpush2.bf16.msra.mxu0 0
  %555 = vmatprep.mubr.bf16.mxu0 0
  %556 = vmatmul.mubr.bf16.gmra.mxu0 %v518
  %v557 = vpop.f32.mrf.mxu0
  %v558 = vadd.f32 0.0, %v557
  %v559 = vpop.f32.mrf.mxu0
  %v560 = vpop.f32.mrf.mxu0
  %v561 = vpop.f32.mrf.mxu0
  %562 = vdwg.mxu0
  %563 = vrot.lane.b32.xlu0 %v173, 112
  %v564 = vpop.permute.xlu0 %563
  %v566 = vsel %vm51, %v418, 0
  %v569 = vsel %vm109, %v564, 0
  %571 = vmatprep.subr.bf16.mxu0 0
  %572 = vmatpush1.bf16.msra.mxu0 0
  %573 = vmatprep.subr.bf16.mxu0 0
  %574 = vmatpush1.bf16.msra.mxu0 0
  %575 = vmatprep.subr.bf16.mxu0 0
  %576 = vmatpush1.bf16.msra.mxu0 0
  %577 = vmatprep.subr.bf16.mxu0 0
  %578 = vmatpush1.bf16.msra.mxu0 0
  %579 = vmatprep.subr.bf16.mxu0 0
  %580 = vmatpush1.bf16.msra.mxu0 0
  %581 = vmatprep.subr.bf16.mxu0 0
  %582 = vmatpush1.bf16.msra.mxu0 0
  %583 = vmatprep.subr.bf16.mxu0 0
  %584 = vmatpush1.bf16.msra.mxu0 0
  %585 = vmatprep.subr.bf16.mxu0 0
  %586 = vmatpush1.bf16.msra.mxu0 %v569
  %587 = vmatprep.subr.bf16.mxu0 0
  %588 = vmatpush2.bf16.msra.mxu0 0
  %589 = vmatprep.subr.bf16.mxu0 0
  %590 = vmatpush2.bf16.msra.mxu0 0
  %591 = vmatprep.subr.bf16.mxu0 0
  %592 = vmatpush2.bf16.msra.mxu0 0
  %593 = vmatprep.subr.bf16.mxu0 0
  %594 = vmatpush2.bf16.msra.mxu0 0
  %595 = vmatprep.subr.bf16.mxu0 0
  %596 = vmatpush2.bf16.msra.mxu0 0
  %597 = vmatprep.subr.bf16.mxu0 0
  %598 = vmatpush2.bf16.msra.mxu0 0
  %599 = vmatprep.subr.bf16.mxu0 0
  %600 = vmatpush2.bf16.msra.mxu0 0
  %601 = vmatprep.subr.bf16.mxu0 0
  %602 = vmatpush2.bf16.msra.mxu0 0
  %603 = vmatprep.mubr.bf16.mxu0 0
  %604 = vmatmul.mubr.bf16.gmra.mxu0 %v566
  %v605 = vpop.f32.mrf.mxu0
  %v606 = vadd.f32 0.0, %v605
  %v607 = vpop.f32.mrf.mxu0
  %v608 = vpop.f32.mrf.mxu0
  %v609 = vpop.f32.mrf.mxu0
  %610 = vdwg.mxu0
  %611 = vst.msk [vmem:[#allocation2] sm:$0xff] %vm177, %v462
  %612 = vst.msk [vmem:[#allocation2 + $0x8] sm:$0xff] %vm177, %v510
  %615 = vrot.lane.b32.xlu0 %v558, 4
  %v616 = vpop.permute.xlu0 %615
  %617 = vrot.lane.b32.xlu0 %v606, 4
  %v618 = vpop.permute.xlu0 %617
  %vm621 = vcmask 64544
  %622 = vst.msk [vmem:[#allocation2] sm:$0xff] %vm621, %v616
  %623 = vst.msk [vmem:[#allocation2 + $0x8] sm:$0xff] %vm621, %v618
  %v624 = vld [vmem:[#allocation2] sm:$0xff]
  %v625 = vld [vmem:[#allocation2 + $0x8] sm:$0xff]
  %v626 = vpack.c.bf16 %v625, %v624
  %v627 = vld [vmem:[%s7] sm:$0xf]
  %v628 = vld [vmem:[%s8] sm:$0x1]
  %v630 = vlaneseq
  %v631 = vshrl.u32 %v630, 7
  %v632 = vsub.s32 0, %v631
  %v633 = vrot.slane %v628, %v632
  %v636 = vsel %vm51, %v626, 0
  %v639 = vsel %vm109, %v627, 0
  %641 = vmatprep.subr.bf16.mxu0 0
  %642 = vmatpush1.bf16.msra.mxu0 0
  %643 = vmatprep.subr.bf16.mxu0 0
  %644 = vmatpush1.bf16.msra.mxu0 0
  %645 = vmatprep.subr.bf16.mxu0 0
  %646 = vmatpush1.bf16.msra.mxu0 0
  %647 = vmatprep.subr.bf16.mxu0 0
  %648 = vmatpush1.bf16.msra.mxu0 0
  %649 = vmatprep.subr.bf16.mxu0 0
  %650 = vmatpush1.bf16.msra.mxu0 0
  %651 = vmatprep.subr.bf16.mxu0 0
  %652 = vmatpush1.bf16.msra.mxu0 0
  %653 = vmatprep.subr.bf16.mxu0 0
  %654 = vmatpush1.bf16.msra.mxu0 0
  %655 = vmatprep.subr.bf16.mxu0 0
  %656 = vmatpush1.bf16.msra.mxu0 %v639
  %657 = vmatprep.subr.bf16.mxu0 0
  %658 = vmatpush2.bf16.msra.mxu0 0
  %659 = vmatprep.subr.bf16.mxu0 0
  %660 = vmatpush2.bf16.msra.mxu0 0
  %661 = vmatprep.subr.bf16.mxu0 0
  %662 = vmatpush2.bf16.msra.mxu0 0
  %663 = vmatprep.subr.bf16.mxu0 0
  %664 = vmatpush2.bf16.msra.mxu0 0
  %665 = vmatprep.subr.bf16.mxu0 0
  %666 = vmatpush2.bf16.msra.mxu0 0
  %667 = vmatprep.subr.bf16.mxu0 0
  %668 = vmatpush2.bf16.msra.mxu0 0
  %669 = vmatprep.subr.bf16.mxu0 0
  %670 = vmatpush2.bf16.msra.mxu0 0
  %671 = vmatprep.subr.bf16.mxu0 0
  %672 = vmatpush2.bf16.msra.mxu0 0
  %673 = vmatprep.mubr.bf16.mxu0 0
  %674 = vmatmul.mubr.bf16.gmra.mxu0 %v636
  %v675 = vpop.f32.mrf.mxu0
  %v676 = vadd.f32 %v633, %v675
  %v677 = vpop.f32.mrf.mxu0
  %v678 = vpop.f32.mrf.mxu0
  %v679 = vadd.f32 %v633, %v678
  %v680 = vpop.f32.mrf.mxu0
  %681 = vdwg.mxu0
  %v682 = vadd.f32 %v47, %v676
  %v683 = vadd.f32 %v48, %v679
  %v684 = vld [vmem:[%s3] sm:$0x1]
  %v685 = vld [vmem:[%s4] sm:$0x1]
  %v686 = vsel %vm51, %v682, 0.0
  %687 = vadd.xlane.f32.xlu0 %v686
  %v688 = vpop.xlane.xlu0 %687
  %v689 = vsel %vm51, %v683, 0.0
  %690 = vadd.xlane.f32.xlu0 %v689
  %v691 = vpop.xlane.xlu0 %690
  %v692 = vmul.f32 %v688, %v58
  %v693 = vmul.f32 %v691, %v58
  %v694 = vsub.f32 %v682, %v692
  %v695 = vsub.f32 %v683, %v693
  %v696 = vmul.f32 %v694, %v694
  %v697 = vmul.f32 %v695, %v695
  %v698 = vsel %vm51, %v696, 0.0
  %699 = vadd.xlane.f32.xlu0 %v698
  %v700 = vpop.xlane.xlu0 %699
  %v701 = vsel %vm51, %v697, 0.0
  %702 = vadd.xlane.f32.xlu0 %v701
  %v703 = vpop.xlane.xlu0 %702
  %v704 = vmul.f32 %v700, %v58
  %v705 = vmul.f32 %v703, %v58
  %v706 = vadd.f32 %v704, 1e-05
  %v707 = vadd.f32 %v705, 1e-05
  %v708 = vrsqrt.pop %v706
  %v709 = vrsqrt.pop %v707
  %v710 = vmul.f32 %v694, %v708
  %v711 = vmul.f32 %v695, %v709
  %v713 = vlaneseq
  %v714 = vshrl.u32 %v713, 7
  %v715 = vsub.s32 0, %v714
  %v716 = vrot.slane %v684, %v715
  %v718 = vmul.f32 %v710, %v716
  %v719 = vmul.f32 %v711, %v716
  %v721 = vlaneseq
  %v722 = vshrl.u32 %v721, 7
  %v723 = vsub.s32 0, %v722
  %v724 = vrot.slane %v685, %v723
  %v726 = vadd.f32 %v718, %v724
  %v727 = vadd.f32 %v719, %v724
  %v728 = vpack.c.bf16 %v727, %v726
  %v729 = vld [vmem:[%s9] sm:$0xf]
  %v730 = vld [vmem:[%s10] sm:$0x1]
  %v732 = vlaneseq
  %v733 = vshrl.u32 %v732, 7
  %v734 = vsub.s32 0, %v733
  %v735 = vrot.slane %v730, %v734
  %v738 = vsel %vm51, %v728, 0
  %v741 = vsel %vm109, %v729, 0
  %743 = vmatprep.subr.bf16.mxu0 0
  %744 = vmatpush1.bf16.msra.mxu0 0
  %745 = vmatprep.subr.bf16.mxu0 0
  %746 = vmatpush1.bf16.msra.mxu0 0
  %747 = vmatprep.subr.bf16.mxu0 0
  %748 = vmatpush1.bf16.msra.mxu0 0
  %749 = vmatprep.subr.bf16.mxu0 0
  %750 = vmatpush1.bf16.msra.mxu0 0
  %751 = vmatprep.subr.bf16.mxu0 0
  %752 = vmatpush1.bf16.msra.mxu0 0
  %753 = vmatprep.subr.bf16.mxu0 0
  %754 = vmatpush1.bf16.msra.mxu0 0
  %755 = vmatprep.subr.bf16.mxu0 0
  %756 = vmatpush1.bf16.msra.mxu0 0
  %757 = vmatprep.subr.bf16.mxu0 0
  %758 = vmatpush1.bf16.msra.mxu0 %v741
  %759 = vmatprep.subr.bf16.mxu0 0
  %760 = vmatpush2.bf16.msra.mxu0 0
  %761 = vmatprep.subr.bf16.mxu0 0
  %762 = vmatpush2.bf16.msra.mxu0 0
  %763 = vmatprep.subr.bf16.mxu0 0
  %764 = vmatpush2.bf16.msra.mxu0 0
  %765 = vmatprep.subr.bf16.mxu0 0
  %766 = vmatpush2.bf16.msra.mxu0 0
  %767 = vmatprep.subr.bf16.mxu0 0
  %768 = vmatpush2.bf16.msra.mxu0 0
  %769 = vmatprep.subr.bf16.mxu0 0
  %770 = vmatpush2.bf16.msra.mxu0 0
  %771 = vmatprep.subr.bf16.mxu0 0
  %772 = vmatpush2.bf16.msra.mxu0 0
  %773 = vmatprep.subr.bf16.mxu0 0
  %774 = vmatpush2.bf16.msra.mxu0 0
  %775 = vmatprep.mubr.bf16.mxu0 0
  %776 = vmatmul.mubr.bf16.gmra.mxu0 %v738
  %v777 = vpop.f32.mrf.mxu0
  %v778 = vadd.f32 %v735, %v777
  %v779 = vpop.f32.mrf.mxu0
  %v780 = vpop.f32.mrf.mxu0
  %v781 = vadd.f32 %v735, %v780
  %v782 = vpop.f32.mrf.mxu0
  %783 = vdwg.mxu0
  %v784 = vmul.f32 %v778, 0.5
  %v785 = vmul.f32 %v781, 0.5
  %v786 = vmul.f32 %v778, 0.70710677
  %v787 = vmul.f32 %v781, 0.70710677
  %v788 = verf.f32.pop %v786
  %v789 = verf.f32.pop %v787
  %v790 = vadd.f32 %v788, 1.0
  %v791 = vadd.f32 %v789, 1.0
  %v792 = vmul.f32 %v784, %v790
  %v793 = vmul.f32 %v785, %v791
  %v794 = vpack.c.bf16 %v793, %v792
  %v795 = vld [vmem:[%s11] sm:$0xf]
  %v796 = vld [vmem:[%s11 + $0x4] sm:$0xf]
  %v797 = vld [vmem:[%s11 + $0x8] sm:$0xf]
  %v798 = vld [vmem:[%s11 + $0xc] sm:$0xf]
  %v799 = vld [vmem:[%s12] sm:$0x1]
  %v801 = vlaneseq
  %v802 = vshrl.u32 %v801, 7
  %v803 = vsub.s32 0, %v802
  %v804 = vrot.slane %v799, %v803
  %v810 = vunpack.c.l.b16 %v795
  %v811 = vunpack.c.l.b16 %v796
  %v812 = vunpack.c.l.b16 %v797
  %v813 = vunpack.c.l.b16 %v798
  %v814 = vpack.c.b16 %v811, %v810
  %v815 = vpack.c.b16 %v813, %v812
  %vm818 = vcmask 261120
  %v820 = vsel %vm818, %v794, 0
  %822 = vmatprep.subr.bf16.mxu0 0
  %823 = vmatpush1.bf16.msra.mxu0 0
  %824 = vmatprep.subr.bf16.mxu0 0
  %825 = vmatpush1.bf16.msra.mxu0 0
  %826 = vmatprep.subr.bf16.mxu0 0
  %827 = vmatpush1.bf16.msra.mxu0 0
  %828 = vmatprep.subr.bf16.mxu0 0
  %829 = vmatpush1.bf16.msra.mxu0 0
  %830 = vmatprep.subr.bf16.mxu0 0
  %831 = vmatpush1.bf16.msra.mxu0 0
  %832 = vmatprep.subr.bf16.mxu0 0
  %833 = vmatpush1.bf16.msra.mxu0 0
  %834 = vmatprep.subr.bf16.mxu0 0
  %835 = vmatpush1.bf16.msra.mxu0 %v815
  %836 = vmatprep.subr.bf16.mxu0 0
  %837 = vmatpush1.bf16.msra.mxu0 %v814
  %838 = vmatprep.subr.bf16.mxu0 0
  %839 = vmatpush2.bf16.msra.mxu0 0
  %840 = vmatprep.subr.bf16.mxu0 0
  %841 = vmatpush2.bf16.msra.mxu0 0
  %842 = vmatprep.subr.bf16.mxu0 0
  %843 = vmatpush2.bf16.msra.mxu0 0
  %844 = vmatprep.subr.bf16.mxu0 0
  %845 = vmatpush2.bf16.msra.mxu0 0
  %846 = vmatprep.subr.bf16.mxu0 0
  %847 = vmatpush2.bf16.msra.mxu0 0
  %848 = vmatprep.subr.bf16.mxu0 0
  %849 = vmatpush2.bf16.msra.mxu0 0
  %850 = vmatprep.subr.bf16.mxu0 0
  %851 = vmatpush2.bf16.msra.mxu0 0
  %852 = vmatprep.subr.bf16.mxu0 0
  %853 = vmatpush2.bf16.msra.mxu0 0
  %854 = vmatprep.mubr.bf16.mxu0 0
  %855 = vmatmul.mubr.bf16.gmra.mxu0 %v820
  %v856 = vpop.f32.mrf.mxu0
  %v857 = vadd.f32 %v804, %v856
  %v858 = vpop.f32.mrf.mxu0
  %v859 = vpop.f32.mrf.mxu0
  %v860 = vadd.f32 %v804, %v859
  %v861 = vpop.f32.mrf.mxu0
  %862 = vdwg.mxu0
  %v863 = vadd.f32 %v682, %v857
  %v864 = vadd.f32 %v683, %v860
  %865 = vst.msk [vmem:[%s13] sm:$0xff] %vm51, %v863
  %866 = vst.msk [vmem:[%s13 + $0x8] sm:$0xff] %vm51, %v864
  // Predicated region
  $region54: #{tpu_custom_call.1} parent=0 // pred_check
    _
  $region55: #{tpu_custom_call.1} parent=0 // pred_check_branch
    %868 = sbr.rel (0) target = $region57
  $region56: #{tpu_custom_call.1} parent=0 // pred_region
    _
  $region57: #{tpu_custom_call.1} parent=0 // pred_fallthru
    _
  // Predicated region
  $region58: #{tpu_custom_call.1} parent=0 // pred_check
    _
  $region59: #{tpu_custom_call.1} parent=0 // pred_check_branch
    %870 = sbr.rel (0) target = $region61
  $region60: #{tpu_custom_call.1} parent=0 // pred_region
    _
  $region61: #{tpu_custom_call.1} parent=0 // pred_fallthru
    _
  // Predicated region
  $region62: #{tpu_custom_call.1} parent=0 // pred_check
    _
  $region63: #{tpu_custom_call.1} parent=0 // pred_check_branch
    %872 = sbr.rel (0) target = $region65
  $region64: #{tpu_custom_call.1} parent=0 // pred_region
    _
  $region65: #{tpu_custom_call.1} parent=0 // pred_fallthru
    _
  // Predicated region
  $region66: #{tpu_custom_call.1} parent=0 // pred_check
    _
  $region67: #{tpu_custom_call.1} parent=0 // pred_check_branch
    %874 = sbr.rel (0) target = $region69
  $region68: #{tpu_custom_call.1} parent=0 // pred_region
    _
  $region69: #{tpu_custom_call.1} parent=0 // pred_fallthru
    _

</llo_original>
